<compile_context>
chip_gen: v7x
topology: tpu7x:2x2x1
jax: 0.10.0
libtpu: 0.0.40
codegen_flags: <defaults>
</compile_context>

<pallas_src>
import jax
import jax.numpy as jnp
from jax.experimental import pallas as pl
from jax.experimental.pallas import tpu as pltpu


def _round_up(x: int, m: int) -> int:
    return ((x + m - 1) // m) * m


def critic_twin_kernel(sT_ref, aT_ref, w1sT_ref, w1aT_ref, b1T_ref,
                       woutT_ref, bout_ref, out_ref):
    # Layer 1 (state-norm pre-folded into W1s/b1), transposed so batch is on lanes:
    #   h1T[d1, tb] = relu(W1sT @ sT + W1aT @ aT + b1T)
    h1 = jnp.dot(w1sT_ref[...], sT_ref[...], preferred_element_type=jnp.float32)
    h1 = h1 + jnp.dot(w1aT_ref[...], aT_ref[...], preferred_element_type=jnp.float32)
    h1 = jnp.maximum(h1 + b1T_ref[...], 0.0)
    # Folded head (enc_sa layer 2 -> dec_q1 -> value re-norm); kept in f32.
    q = jnp.dot(woutT_ref[...], h1, preferred_element_type=jnp.float32)
    out_ref[...] = (q + bout_ref[...]).astype(out_ref.dtype)


def fold_params(params, compute_dtype=jnp.float32):
    """Fold state-norm into W1/b1, collapse layer2 + dec_q1 + value-renorm, transpose."""
    inv_std = 1.0 / params["state_std"]                                    # [1, S]
    w1s = params["w1s"] * inv_std.T                                        # [S, d1]
    b1 = params["b1"] - (params["state_avg"] * inv_std) @ params["w1s"]    # [1, d1]
    w_out = (params["w2"] @ params["wq"]) * params["value_std"]            # [d1, 1]
    b_out = (params["b2"] @ params["wq"] + params["bq"]) * params["value_std"] \
            + params["value_avg"]                                          # [1, 1]
    return (w1s.T.astype(compute_dtype),             # [d1, S]  (big-operand dtype)
            params["w1a"].T.astype(compute_dtype),   # [d1, A]
            b1.T.astype(jnp.float32),                # [d1, 1]  (head stays f32)
            w_out.T.astype(jnp.float32),             # [1, d1]
            b_out.astype(jnp.float32))               # [1, 1]


def critic_twin_forward(state, action, params, *,
                        tile_b: int = 32768,
                        compute_dtype=jnp.float32):
    """Pallas wrapper. state: [B, S], action: [B, A] -> value: [B, 1] (float32)."""
    B, S = state.shape
    A = action.shape[1]
    w1sT, w1aT, b1T, woutT, bout = fold_params(params, compute_dtype)
    d1 = w1sT.shape[0]
    d_in = S + A

    # Transposed activations: batch on the lane axis; no cat()/pad() materialised.
    sT = state.T.astype(compute_dtype)        # [S, B]
    aT = action.T.astype(compute_dtype)       # [A, B]

    # Batch tile (lane axis): multiple of 128, big enough to amortise the ~0.35us
    # per-grid-step overhead, capped at the (lane-rounded) batch, and clamped so
    # the grid has >= 2 steps for megacore once the batch is big enough.
    B_lanes = _round_up(B, 128)
    tb = min(_round_up(max(tile_b, 128), 128), B_lanes)
    if B_lanes >= 256:
        tb = min(tb, _round_up(pl.cdiv(B, 2), 128))
    grid = (pl.cdiv(B, tb),)

    act_bytes = jnp.dtype(compute_dtype).itemsize
    cost = pl.CostEstimate(
        flops=2 * B * d_in * d1 + 2 * B * d1,
        transcendentals=0,
        bytes_accessed=B * d_in * act_bytes + B * 4
                       + d_in * d1 * act_bytes + (2 * d1 + 1) * 4,
    )

    out = pl.pallas_call(
        critic_twin_kernel,
        out_shape=jax.ShapeDtypeStruct((1, B), jnp.float32),
        grid=grid,
        in_specs=[
            pl.BlockSpec((S, tb), lambda i: (0, i)),   # sT: batch-tiled, lane-dense
            pl.BlockSpec((A, tb), lambda i: (0, i)),   # aT: batch-tiled, lane-dense
            pl.BlockSpec((d1, S), lambda i: (0, 0)),   # weights: VMEM-resident
            pl.BlockSpec((d1, A), lambda i: (0, 0)),
            pl.BlockSpec((d1, 1), lambda i: (0, 0)),
            pl.BlockSpec((1, d1), lambda i: (0, 0)),
            pl.BlockSpec((1, 1), lambda i: (0, 0)),
        ],
        out_specs=pl.BlockSpec((1, tb), lambda i: (0, i)),   # lane-dense output
        compiler_params=pltpu.CompilerParams(
            dimension_semantics=("parallel",),        # megacore split on v7x
            vmem_limit_bytes=32 * 1024 * 1024,        # raise v5e's 16 MiB default
        ),
        cost_estimate=cost,
    )(sT, aT, w1sT, w1aT, b1T, woutT, bout)

    return out.reshape(B, 1)


def init_params(key, state_dim, action_dim, dims):
    """Deterministic synthetic parameters matching CriticTwin(dims, state_dim, action_dim)."""
    d_in = state_dim + action_dim
    d1, d2 = dims
    ks = jax.random.split(key, 6)

    def lin(k, fan_in, fan_out):
        # PyTorch Linear default init, stored pre-transposed as [in, out].
        bound = 1.0 / jnp.sqrt(jnp.float32(fan_in))
        kw, kb = jax.random.split(k)
        w = jax.random.uniform(kw, (fan_in, fan_out), jnp.float32, -bound, bound)
        b = jax.random.uniform(kb, (1, fan_out), jnp.float32, -bound, bound)
        return w, b

    w1, b1 = lin(ks[0], d_in, d1)       # enc_sa Linear 0
    w2, b2 = lin(ks[1], d1, d2)         # enc_sa Linear 1 (no trailing ReLU)
    wq, bq = lin(ks[2], d2, 1)          # dec_q1

    # CriticBase buffers (non-trained); perturbed so the norm paths are exercised.
    state_avg = 0.1 * jax.random.normal(ks[3], (1, state_dim), jnp.float32)
    state_std = 1.0 + 0.1 * jax.random.uniform(ks[4], (1, state_dim), jnp.float32)
    value_avg = jnp.full((1, 1), 0.05, jnp.float32)
    value_std = jnp.full((1, 1), 1.25, jnp.float32)

    return {
        "w1s": w1[:state_dim], "w1a": w1[state_dim:], "b1": b1,
        "w2": w2, "b2": b2,
        "wq": wq, "bq": bq,
        "state_avg": state_avg, "state_std": state_std,
        "value_avg": value_avg, "value_std": value_std,
    }


def critic_twin_reference(state, action, p):
    """Pure-JAX reference of CriticTwin.forward (un-folded algebra)."""
    s = (state - p["state_avg"]) / p["state_std"]
    sa = jnp.concatenate([s, action], axis=1)
    w1 = jnp.concatenate([p["w1s"], p["w1a"]], axis=0)
    h1 = jnp.maximum(sa @ w1 + p["b1"], 0.0)
    h2 = h1 @ p["w2"] + p["b2"]
    q1 = h2 @ p["wq"] + p["bq"]
    return q1 * p["value_std"] + p["value_avg"]


if __name__ == "__main__":
    # Small shapes consistent with the module: dims=[32, 32], state_dim=8, action_dim=4.
    B, STATE_DIM, ACTION_DIM = 2, 8, 4
    DIMS = (32, 32)

    key = jax.random.PRNGKey(0)
    k_state, k_action, k_params, k_big = jax.random.split(key, 4)

    state = jax.random.normal(k_state, (B, STATE_DIM), jnp.float32)
    action = jax.random.normal(k_action, (B, ACTION_DIM), jnp.float32)
    params = init_params(k_params, STATE_DIM, ACTION_DIM, DIMS)

    # f32 path (single grid step, partial-block masking for B=2 < 128 lanes).
    out = jax.block_until_ready(critic_twin_forward(state, action, params))
    ref = critic_twin_reference(state, action, params)
    assert out.shape == (B, 1)
    assert jnp.allclose(out, ref, atol=1e-4, rtol=1e-4), (out, ref)

    # Multi-step grid path (non-divisible batch, masked final block), still f32.
    B2 = 300
    kb1, kb2 = jax.random.split(k_big)
    state2 = jax.random.normal(kb1, (B2, STATE_DIM), jnp.float32)
    action2 = jax.random.normal(kb2, (B2, ACTION_DIM), jnp.float32)
    out2 = jax.block_until_ready(
        critic_twin_forward(state2, action2, params, tile_b=128))
    ref2 = critic_twin_reference(state2, action2, params)
    assert out2.shape == (B2, 1)
    assert jnp.allclose(out2, ref2, atol=1e-4, rtol=1e-4)

    # bf16 big-operand path (sT/aT/W1 in bf16; head + biases stay f32).
    out_bf16 = jax.block_until_ready(
        critic_twin_forward(state2, action2, params, tile_b=128,
                            compute_dtype=jnp.bfloat16))
    assert jnp.allclose(out_bf16, ref2, atol=3e-2, rtol=3e-2)

    print("KERNEL_OK")
</pallas_src>

<mosaic_0001>
module attributes {stable_mosaic.version = 11 : i64} {
  func.func @critic_twin_kernel(%arg0: i32, %arg1: memref<8x128xf32, #tpu.memory_space<vmem>>, %arg2: memref<4x128xf32, #tpu.memory_space<vmem>>, %arg3: memref<32x8xf32, #tpu.memory_space<vmem>>, %arg4: memref<32x4xf32, #tpu.memory_space<vmem>>, %arg5: memref<32x1xf32, #tpu.memory_space<vmem>>, %arg6: memref<1x32xf32, #tpu.memory_space<vmem>>, %arg7: memref<1x1xf32, #tpu.memory_space<vmem>>, %arg8: memref<1x128xf32, #tpu.memory_space<vmem>>) attributes {dimension_semantics = [#tpu.dimension_semantics<parallel>], iteration_bounds = array<i64: 1>, scalar_prefetch = 0 : i64, scratch_operands = 0 : i64, tpu.core_type = #tpu.core_type<tc>, window_params = [{transform_indices = @transform_0, window_bounds = array<i64: 8, 128>}, {transform_indices = @transform_1, window_bounds = array<i64: 4, 128>}, {pipeline_mode = #tpu.pipeline_mode<synchronous>, transform_indices = @transform_2, window_bounds = array<i64: 32, 8>}, {pipeline_mode = #tpu.pipeline_mode<synchronous>, transform_indices = @transform_3, window_bounds = array<i64: 32, 4>}, {pipeline_mode = #tpu.pipeline_mode<synchronous>, transform_indices = @transform_4, window_bounds = array<i64: 32, 1>}, {pipeline_mode = #tpu.pipeline_mode<synchronous>, transform_indices = @transform_5, window_bounds = array<i64: 1, 32>}, {pipeline_mode = #tpu.pipeline_mode<synchronous>, transform_indices = @transform_6, window_bounds = array<i64: 1, 1>}, {transform_indices = @transform_7, window_bounds = array<i64: 1, 128>}]} {
    %c0 = arith.constant 0 : index
    %c0_0 = arith.constant 0 : index
    %0 = vector.load %arg3[%c0, %c0_0] : memref<32x8xf32, #tpu.memory_space<vmem>>, vector<32x8xf32>
    %c0_1 = arith.constant 0 : index
    %c0_2 = arith.constant 0 : index
    %1 = vector.load %arg1[%c0_1, %c0_2] : memref<8x128xf32, #tpu.memory_space<vmem>>, vector<8x128xf32>
    %cst = arith.constant dense<0.000000e+00> : vector<32x128xf32>
    %2 = tpu.matmul %0, %1, %cst {dimension_numbers = #tpu.dot_dimension_numbers<[1], [0], [0], [1], [0, 0, 1, 1], [], []>} : vector<32x8xf32>, vector<8x128xf32>, vector<32x128xf32> -> vector<32x128xf32>
    %c0_3 = arith.constant 0 : index
    %c0_4 = arith.constant 0 : index
    %3 = vector.load %arg4[%c0_3, %c0_4] : memref<32x4xf32, #tpu.memory_space<vmem>>, vector<32x4xf32>
    %c0_5 = arith.constant 0 : index
    %c0_6 = arith.constant 0 : index
    %4 = vector.load %arg2[%c0_5, %c0_6] : memref<4x128xf32, #tpu.memory_space<vmem>>, vector<4x128xf32>
    %cst_7 = arith.constant dense<0.000000e+00> : vector<32x128xf32>
    %5 = tpu.matmul %3, %4, %cst_7 {dimension_numbers = #tpu.dot_dimension_numbers<[1], [0], [0], [1], [0, 0, 1, 1], [], []>} : vector<32x4xf32>, vector<4x128xf32>, vector<32x128xf32> -> vector<32x128xf32>
    %6 = arith.addf %2, %5 : vector<32x128xf32>
    %c0_8 = arith.constant 0 : index
    %c0_9 = arith.constant 0 : index
    %7 = vector.load %arg5[%c0_8, %c0_9] : memref<32x1xf32, #tpu.memory_space<vmem>>, vector<32x1xf32>
    %8 = vector.broadcast %7 : vector<32x1xf32> to vector<32x128xf32>
    %9 = arith.addf %6, %8 : vector<32x128xf32>
    %cst_10 = arith.constant 0.000000e+00 : f32
    %10 = vector.broadcast %cst_10 : f32 to vector<32x128xf32>
    %11 = arith.maximumf %9, %10 : vector<32x128xf32>
    %c0_11 = arith.constant 0 : index
    %c0_12 = arith.constant 0 : index
    %12 = vector.load %arg6[%c0_11, %c0_12] : memref<1x32xf32, #tpu.memory_space<vmem>>, vector<1x32xf32>
    %cst_13 = arith.constant dense<0.000000e+00> : vector<1x128xf32>
    %13 = tpu.matmul %12, %11, %cst_13 {dimension_numbers = #tpu.dot_dimension_numbers<[1], [0], [0], [1], [0, 0, 1, 1], [], []>} : vector<1x32xf32>, vector<32x128xf32>, vector<1x128xf32> -> vector<1x128xf32>
    %c0_14 = arith.constant 0 : index
    %c0_15 = arith.constant 0 : index
    %14 = vector.load %arg7[%c0_14, %c0_15] : memref<1x1xf32, #tpu.memory_space<vmem>>, vector<1x1xf32>
    %15 = vector.broadcast %14 : vector<1x1xf32> to vector<1x128xf32>
    %16 = arith.addf %13, %15 : vector<1x128xf32>
    %c0_16 = arith.constant 0 : index
    %c0_17 = arith.constant 0 : index
    %17 = vector.load %arg8[%c0_16, %c0_17] : memref<1x128xf32, #tpu.memory_space<vmem>>, vector<1x128xf32>
    tpu.vector_store %arg8[%c0_16, %c0_17], %16 {strides = array<i32>} : memref<1x128xf32, #tpu.memory_space<vmem>>, vector<1x128xf32>,
    return
  }
  func.func @transform_0(%arg0: i32) -> (i32, i32) {
    %c0_i32 = arith.constant 0 : i32
    %c0_i32_0 = arith.constant 0 : i32
    return %c0_i32, %arg0 : i32, i32
  }
  func.func @transform_1(%arg0: i32) -> (i32, i32) {
    %c0_i32 = arith.constant 0 : i32
    %c0_i32_0 = arith.constant 0 : i32
    return %c0_i32, %arg0 : i32, i32
  }
  func.func @transform_2(%arg0: i32) -> (i32, i32) {
    %c0_i32 = arith.constant 0 : i32
    %c0_i32_0 = arith.constant 0 : i32
    %c0_i32_1 = arith.constant 0 : i32
    return %c0_i32, %c0_i32_0 : i32, i32
  }
  func.func @transform_3(%arg0: i32) -> (i32, i32) {
    %c0_i32 = arith.constant 0 : i32
    %c0_i32_0 = arith.constant 0 : i32
    %c0_i32_1 = arith.constant 0 : i32
    return %c0_i32, %c0_i32_0 : i32, i32
  }
  func.func @transform_4(%arg0: i32) -> (i32, i32) {
    %c0_i32 = arith.constant 0 : i32
    %c0_i32_0 = arith.constant 0 : i32
    %c0_i32_1 = arith.constant 0 : i32
    return %c0_i32, %c0_i32_0 : i32, i32
  }
  func.func @transform_5(%arg0: i32) -> (i32, i32) {
    %c0_i32 = arith.constant 0 : i32
    %c0_i32_0 = arith.constant 0 : i32
    %c0_i32_1 = arith.constant 0 : i32
    return %c0_i32, %c0_i32_0 : i32, i32
  }
  func.func @transform_6(%arg0: i32) -> (i32, i32) {
    %c0_i32 = arith.constant 0 : i32
    %c0_i32_0 = arith.constant 0 : i32
    %c0_i32_1 = arith.constant 0 : i32
    return %c0_i32, %c0_i32_0 : i32, i32
  }
  func.func @transform_7(%arg0: i32) -> (i32, i32) {
    %c0_i32 = arith.constant 0 : i32
    %c0_i32_0 = arith.constant 0 : i32
    return %c0_i32, %arg0 : i32, i32
  }
}

</mosaic_0001>

<llo_original>
// kernel: tpu_custom_call.1
$region0: #{tpu_custom_call.1}
  #allocation0 [shape = 'u32[]', space=smem, size = 0x4, offset = 0x4, fixed_abs, tag = 'smem constant byte address 0x4 - core index']
  #allocation1 [shape = 'u32[144,128]{1,0:T(1,128)}', space=vmem, size = 0x12000, scoped, tag = 'internal scratch']
  #allocation2 [shape = 'f32[1,1]{1,0:T(1,128)S(1)}', space=vmem, size = 0x200, scoped, tag = 'scoped memory for tpu_custom_call.1']
  %s0 = inlined_call_operand.vmem [shape: f32[8,2], index: 0, kind: input, shape index: {}]
  %s1 = inlined_call_operand.vmem [shape: f32[4,2], index: 1, kind: input, shape index: {}]
  %s2 = inlined_call_operand.vmem [shape: f32[32,8], index: 2, kind: input, shape index: {}]
  %s3 = inlined_call_operand.vmem [shape: f32[32,4], index: 3, kind: input, shape index: {}]
  %s4 = inlined_call_operand.vmem [shape: f32[32,1], index: 4, kind: input, shape index: {}]
  %s5 = inlined_call_operand.vmem [shape: f32[1,32], index: 5, kind: input, shape index: {}]
  %s6 = inlined_call_operand.<no memory space> [shape: f32[1,1], index: 6, kind: input, shape index: {}]
  %s7 = inlined_call_operand.hbm [shape: f32[1,2], index: 7, kind: output, shape index: {}]
  %s8 = sld [smem:[#allocation0]]
  $region38: #{tpu_custom_call.1} parent=0
    _
  %s10 = ssub.s32 1, %s8
  %s11 = scalar_select 0, %s10, %s8
  %v12 = vstv %s6
  %13 = vst [vmem:[#allocation2] sm:$0x1] %v12
  $region1: #{tpu_custom_call.1} parent=0
    #allocation3 [shape = 'u8[512]{0}', space=vmem, size = 0x400, scoped, tag = 'output window, operand 0, single buffered']
    #allocation4 [shape = 's32[1]{0}', space=sflag, size = 0x4, scoped, tag = 'scoped memory for tpu_custom_call.1']
    %14 = vsyncpa [#allocation4], 0
    // Predicated region
    $region2: #{tpu_custom_call.1} parent=1 // pred_check
      _
    $region3: #{tpu_custom_call.1} parent=1 // pred_check_branch
      %16 = sbr.rel (0) target = $region5
    $region4: #{tpu_custom_call.1} parent=1 // pred_region
      _
    $region5: #{tpu_custom_call.1} parent=1 // pred_fallthru
      _
    // Predicated region
    $region6: #{tpu_custom_call.1} parent=1 // pred_check
      _
    $region7: #{tpu_custom_call.1} parent=1 // pred_check_branch
      %18 = sbr.rel (0) target = $region9
    $region8: #{tpu_custom_call.1} parent=1 // pred_region
      _
    $region9: #{tpu_custom_call.1} parent=1 // pred_fallthru
      _
    // Predicated region
    $region10: #{tpu_custom_call.1} parent=1 // pred_check
      _
    $region11: #{tpu_custom_call.1} parent=1 // pred_check_branch
      %20 = sbr.rel (0) target = $region13
    $region12: #{tpu_custom_call.1} parent=1 // pred_region
      _
    $region13: #{tpu_custom_call.1} parent=1 // pred_fallthru
      _
    // Predicated region
    $region14: #{tpu_custom_call.1} parent=1 // pred_check
      _
    $region15: #{tpu_custom_call.1} parent=1 // pred_check_branch
      %22 = sbr.rel (0) target = $region17
    $region16: #{tpu_custom_call.1} parent=1 // pred_region
      _
    $region17: #{tpu_custom_call.1} parent=1 // pred_fallthru
      _
    // Predicated region
    $region18: #{tpu_custom_call.1} parent=1 // pred_check
      _
    $region19: #{tpu_custom_call.1} parent=1 // pred_check_branch
      %24 = sbr.rel (0) target = $region21
    $region20: #{tpu_custom_call.1} parent=1 // pred_region
      _
    $region21: #{tpu_custom_call.1} parent=1 // pred_fallthru
      _
    // Predicated region
    $region22: #{tpu_custom_call.1} parent=1 // pred_check
      _
    $region23: #{tpu_custom_call.1} parent=1 // pred_check_branch
      %26 = sbr.rel (0) target = $region25
    $region24: #{tpu_custom_call.1} parent=1 // pred_region
      _
    $region25: #{tpu_custom_call.1} parent=1 // pred_fallthru
      _
    // Predicated region
    $region26: #{tpu_custom_call.1} parent=1 // pred_check
      _
    $region27: #{tpu_custom_call.1} parent=1 // pred_check_branch
      %28 = sbr.rel (0) target = $region29
    $region28: #{tpu_custom_call.1} parent=1 // pred_region
      _
    $region29: #{tpu_custom_call.1} parent=1 // pred_fallthru
      _
    %v29 = vld [vmem:[%s2] sm:$0xff]
    %v30 = vld [vmem:[%s2 + $0x8] sm:$0xff]
    %v31 = vld [vmem:[%s2 + $0x10] sm:$0xff]
    %v32 = vld [vmem:[%s2 + $0x18] sm:$0xff]
    %v33 = vld [vmem:[%s0] sm:$0xff]
    %v34 = vld [vmem:[%s3] sm:$0xff]
    %v35 = vld [vmem:[%s3 + $0x8] sm:$0xff]
    %v36 = vld [vmem:[%s3 + $0x10] sm:$0xff]
    %v37 = vld [vmem:[%s3 + $0x18] sm:$0xff]
    %v38 = vld [vmem:[%s1] sm:$0xf]
    %vm39 = vcmask 31744
    %v41 = vsel %vm39, %v34, 0
    %v44 = vsel %vm39, %v35, 0
    %v47 = vsel %vm39, %v36, 0
    %v50 = vsel %vm39, %v37, 0
    %vm52 = vcmask 1043456
    %v54 = vsel %vm52, %v38, 0
    %56 = vmatprep.subr.mxu0 0.0
    %57 = vmatpush1.msra.mxu0 %v54
    %58 = vmatprep.subr.mxu0 0.0
    %59 = vmatpush1.msra.mxu0 0.0
    %60 = vmatprep.subr.mxu0 0.0
    %61 = vmatpush1.msra.mxu0 0.0
    %62 = vmatprep.subr.mxu0 0.0
    %63 = vmatpush1.msra.mxu0 0.0
    %64 = vmatprep.subr.mxu0 0.0
    %65 = vmatpush1.msra.mxu0 0.0
    %66 = vmatprep.subr.mxu0 0.0
    %67 = vmatpush1.msra.mxu0 0.0
    %68 = vmatprep.subr.mxu0 0.0
    %69 = vmatpush1.msra.mxu0 0.0
    %70 = vmatprep.subr.mxu0 0.0
    %71 = vmatpush1.msra.mxu0 0.0
    %72 = vmatprep.subr.mxu0 0.0
    %73 = vmatpush1.msra.mxu0 0.0
    %74 = vmatprep.subr.mxu0 0.0
    %75 = vmatpush1.msra.mxu0 0.0
    %76 = vmatprep.subr.mxu0 0.0
    %77 = vmatpush1.msra.mxu0 0.0
    %78 = vmatprep.subr.mxu0 0.0
    %79 = vmatpush1.msra.mxu0 0.0
    %80 = vmatprep.subr.mxu0 0.0
    %81 = vmatpush1.msra.mxu0 0.0
    %82 = vmatprep.subr.mxu0 0.0
    %83 = vmatpush1.msra.mxu0 0.0
    %84 = vmatprep.subr.mxu0 0.0
    %85 = vmatpush1.msra.mxu0 0.0
    %86 = vmatprep.subr.mxu0 0.0
    %87 = vmatpush1.msra.mxu0 0.0
    %88 = vmatprep.subr.mxu0 0.0
    %89 = vmatpush1.msra.mxu0 0.0
    %90 = vmatprep.subr.mxu0 0.0
    %91 = vmatpush1.msra.mxu0 0.0
    %92 = vmatprep.subr.mxu0 0.0
    %93 = vmatpush1.msra.mxu0 0.0
    %94 = vmatprep.subr.mxu0 0.0
    %95 = vmatpush1.msra.mxu0 0.0
    %96 = vmatprep.subr.mxu0 0.0
    %97 = vmatpush1.msra.mxu0 0.0
    %98 = vmatprep.subr.mxu0 0.0
    %99 = vmatpush1.msra.mxu0 0.0
    %100 = vmatprep.subr.mxu0 0.0
    %101 = vmatpush1.msra.mxu0 0.0
    %102 = vmatprep.subr.mxu0 0.0
    %103 = vmatpush1.msra.mxu0 0.0
    %104 = vmatprep.subr.mxu0 0.0
    %105 = vmatpush1.msra.mxu0 0.0
    %106 = vmatprep.subr.mxu0 0.0
    %107 = vmatpush1.msra.mxu0 0.0
    %108 = vmatprep.subr.mxu0 0.0
    %109 = vmatpush1.msra.mxu0 0.0
    %110 = vmatprep.subr.mxu0 0.0
    %111 = vmatpush1.msra.mxu0 0.0
    %112 = vmatprep.subr.mxu0 0.0
    %113 = vmatpush1.msra.mxu0 0.0
    %114 = vmatprep.subr.mxu0 0.0
    %115 = vmatpush1.msra.mxu0 0.0
    %116 = vmatprep.subr.mxu0 0.0
    %117 = vmatpush1.msra.mxu0 0.0
    %118 = vmatprep.subr.mxu0 0.0
    %119 = vmatpush1.msra.mxu0 0.0
    %120 = vmatprep.mubr.f32.mxu0 0.0
    %121 = vmatmul.mubr.f32.gmra.mrb[0].mxu0 %v41
    %v122 = vpop.f32.mrb[0].mxu0
    %v123 = vadd.f32 0.0, %v122
    %v124 = vpop.f32.mrb[0].mxu0
    %125 = vmatprep.mubr.f32.mxu0 0.0
    %126 = vmatmul.mubr.f32.gmra.mrb[0].mxu0 %v44
    %v127 = vpop.f32.mrb[0].mxu0
    %v128 = vadd.f32 0.0, %v127
    %v129 = vpop.f32.mrb[0].mxu0
    %130 = vmatprep.mubr.f32.mxu0 0.0
    %131 = vmatmul.mubr.f32.gmra.mrb[0].mxu0 %v47
    %v132 = vpop.f32.mrb[0].mxu0
    %v133 = vadd.f32 0.0, %v132
    %v134 = vpop.f32.mrb[0].mxu0
    %135 = vmatprep.mubr.f32.mxu0 0.0
    %136 = vmatmul.mubr.f32.gmra.mrb[0].mxu0 %v50
    %v137 = vpop.f32.mrb[0].mxu0
    %v138 = vadd.f32 0.0, %v137
    %v139 = vpop.f32.mrb[0].mxu0
    %140 = vdwg.mxu0
    %vm141 = vcmask 64512
    %v143 = vsel %vm141, %v29, 0
    %v146 = vsel %vm141, %v30, 0
    %v149 = vsel %vm141, %v31, 0
    %v152 = vsel %vm141, %v32, 0
    %154 = vmatprep.subr.mxu0 0.0
    %155 = vmatpush1.msra.mxu0 %v33
    %156 = vmatprep.subr.mxu0 0.0
    %157 = vmatpush1.msra.mxu0 0.0
    %158 = vmatprep.subr.mxu0 0.0
    %159 = vmatpush1.msra.mxu0 0.0
    %160 = vmatprep.subr.mxu0 0.0
    %161 = vmatpush1.msra.mxu0 0.0
    %162 = vmatprep.subr.mxu0 0.0
    %163 = vmatpush1.msra.mxu0 0.0
    %164 = vmatprep.subr.mxu0 0.0
    %165 = vmatpush1.msra.mxu0 0.0
    %166 = vmatprep.subr.mxu0 0.0
    %167 = vmatpush1.msra.mxu0 0.0
    %168 = vmatprep.subr.mxu0 0.0
    %169 = vmatpush1.msra.mxu0 0.0
    %170 = vmatprep.subr.mxu0 0.0
    %171 = vmatpush1.msra.mxu0 0.0
    %172 = vmatprep.subr.mxu0 0.0
    %173 = vmatpush1.msra.mxu0 0.0
    %174 = vmatprep.subr.mxu0 0.0
    %175 = vmatpush1.msra.mxu0 0.0
    %176 = vmatprep.subr.mxu0 0.0
    %177 = vmatpush1.msra.mxu0 0.0
    %178 = vmatprep.subr.mxu0 0.0
    %179 = vmatpush1.msra.mxu0 0.0
    %180 = vmatprep.subr.mxu0 0.0
    %181 = vmatpush1.msra.mxu0 0.0
    %182 = vmatprep.subr.mxu0 0.0
    %183 = vmatpush1.msra.mxu0 0.0
    %184 = vmatprep.subr.mxu0 0.0
    %185 = vmatpush1.msra.mxu0 0.0
    %186 = vmatprep.subr.mxu0 0.0
    %187 = vmatpush1.msra.mxu0 0.0
    %188 = vmatprep.subr.mxu0 0.0
    %189 = vmatpush1.msra.mxu0 0.0
    %190 = vmatprep.subr.mxu0 0.0
    %191 = vmatpush1.msra.mxu0 0.0
    %192 = vmatprep.subr.mxu0 0.0
    %193 = vmatpush1.msra.mxu0 0.0
    %194 = vmatprep.subr.mxu0 0.0
    %195 = vmatpush1.msra.mxu0 0.0
    %196 = vmatprep.subr.mxu0 0.0
    %197 = vmatpush1.msra.mxu0 0.0
    %198 = vmatprep.subr.mxu0 0.0
    %199 = vmatpush1.msra.mxu0 0.0
    %200 = vmatprep.subr.mxu0 0.0
    %201 = vmatpush1.msra.mxu0 0.0
    %202 = vmatprep.subr.mxu0 0.0
    %203 = vmatpush1.msra.mxu0 0.0
    %204 = vmatprep.subr.mxu0 0.0
    %205 = vmatpush1.msra.mxu0 0.0
    %206 = vmatprep.subr.mxu0 0.0
    %207 = vmatpush1.msra.mxu0 0.0
    %208 = vmatprep.subr.mxu0 0.0
    %209 = vmatpush1.msra.mxu0 0.0
    %210 = vmatprep.subr.mxu0 0.0
    %211 = vmatpush1.msra.mxu0 0.0
    %212 = vmatprep.subr.mxu0 0.0
    %213 = vmatpush1.msra.mxu0 0.0
    %214 = vmatprep.subr.mxu0 0.0
    %215 = vmatpush1.msra.mxu0 0.0
    %216 = vmatprep.subr.mxu0 0.0
    %217 = vmatpush1.msra.mxu0 0.0
    %218 = vmatprep.mubr.f32.mxu0 0.0
    %219 = vmatmul.mubr.f32.gmra.mrb[0].mxu0 %v143
    %v220 = vpop.f32.mrb[0].mxu0
    %v221 = vadd.f32 %v123, %v220
    %v222 = vpop.f32.mrb[0].mxu0
    %223 = vmatprep.mubr.f32.mxu0 0.0
    %224 = vmatmul.mubr.f32.gmra.mrb[0].mxu0 %v146
    %v225 = vpop.f32.mrb[0].mxu0
    %v226 = vadd.f32 %v128, %v225
    %v227 = vpop.f32.mrb[0].mxu0
    %228 = vmatprep.mubr.f32.mxu0 0.0
    %229 = vmatmul.mubr.f32.gmra.mrb[0].mxu0 %v149
    %v230 = vpop.f32.mrb[0].mxu0
    %v231 = vadd.f32 %v133, %v230
    %v232 = vpop.f32.mrb[0].mxu0
    %233 = vmatprep.mubr.f32.mxu0 0.0
    %234 = vmatmul.mubr.f32.gmra.mrb[0].mxu0 %v152
    %v235 = vpop.f32.mrb[0].mxu0
    %v236 = vadd.f32 %v138, %v235
    %v237 = vpop.f32.mrb[0].mxu0
    %238 = vdwg.mxu0
    %v239 = vld [vmem:[%s4] sm:$0xff]
    %v240 = vld [vmem:[%s4 + $0x8] sm:$0xff]
    %v241 = vld [vmem:[%s4 + $0x10] sm:$0xff]
    %v242 = vld [vmem:[%s4 + $0x18] sm:$0xff]
    %244 = vset.pattern.permute.xlu0 0
    %245 = vperm.xlu0 %244, %v239
    %v246 = vpop.permute.xlu0 %245
    %249 = vset.pattern.permute.xlu0 0
    %250 = vperm.xlu0 %249, %v240
    %v251 = vpop.permute.xlu0 %250
    %254 = vset.pattern.permute.xlu0 0
    %255 = vperm.xlu0 %254, %v241
    %v256 = vpop.permute.xlu0 %255
    %259 = vset.pattern.permute.xlu0 0
    %260 = vperm.xlu0 %259, %v242
    %v261 = vpop.permute.xlu0 %260
    %v263 = vadd.f32 %v221, %v246
    %v264 = vadd.f32 %v226, %v251
    %v265 = vadd.f32 %v231, %v256
    %v266 = vadd.f32 %v236, %v261
    %v267 = vmax.f32 %v263, 0.0
    %v268 = vmax.f32 %v264, 0.0
    %v269 = vmax.f32 %v265, 0.0
    %v270 = vmax.f32 %v266, 0.0
    %v271 = vld [vmem:[%s5] sm:$0x1]
    %v272 = vld [vmem:[#allocation2] sm:$0x1]
    %274 = vset.pattern.permute.xlu0 0
    %275 = vperm.xlu0 %274, %v272
    %v276 = vpop.permute.xlu0 %275
    %v278 = vlaneseq
    %v279 = vshrl.u32 %v278, 7
    %v280 = vsub.s32 0, %v279
    %v281 = vrot.slane %v276, %v280
    %vm282 = vcmask 261120
    %v284 = vsel %vm282, %v271, 0
    %286 = vmatprep.subr.mxu0 0.0
    %287 = vmatpush1.msra.mxu0 %v267
    %288 = vmatprep.subr.mxu0 0.0
    %289 = vmatpush1.msra.mxu0 %v268
    %290 = vmatprep.subr.mxu0 0.0
    %291 = vmatpush1.msra.mxu0 %v269
    %292 = vmatprep.subr.mxu0 0.0
    %293 = vmatpush1.msra.mxu0 %v270
    %294 = vmatprep.subr.mxu0 0.0
    %295 = vmatpush1.msra.mxu0 0.0
    %296 = vmatprep.subr.mxu0 0.0
    %297 = vmatpush1.msra.mxu0 0.0
    %298 = vmatprep.subr.mxu0 0.0
    %299 = vmatpush1.msra.mxu0 0.0
    %300 = vmatprep.subr.mxu0 0.0
    %301 = vmatpush1.msra.mxu0 0.0
    %302 = vmatprep.subr.mxu0 0.0
    %303 = vmatpush1.msra.mxu0 0.0
    %304 = vmatprep.subr.mxu0 0.0
    %305 = vmatpush1.msra.mxu0 0.0
    %306 = vmatprep.subr.mxu0 0.0
    %307 = vmatpush1.msra.mxu0 0.0
    %308 = vmatprep.subr.mxu0 0.0
    %309 = vmatpush1.msra.mxu0 0.0
    %310 = vmatprep.subr.mxu0 0.0
    %311 = vmatpush1.msra.mxu0 0.0
    %312 = vmatprep.subr.mxu0 0.0
    %313 = vmatpush1.msra.mxu0 0.0
    %314 = vmatprep.subr.mxu0 0.0
    %315 = vmatpush1.msra.mxu0 0.0
    %316 = vmatprep.subr.mxu0 0.0
    %317 = vmatpush1.msra.mxu0 0.0
    %318 = vmatprep.subr.mxu0 0.0
    %319 = vmatpush1.msra.mxu0 0.0
    %320 = vmatprep.subr.mxu0 0.0
    %321 = vmatpush1.msra.mxu0 0.0
    %322 = vmatprep.subr.mxu0 0.0
    %323 = vmatpush1.msra.mxu0 0.0
    %324 = vmatprep.subr.mxu0 0.0
    %325 = vmatpush1.msra.mxu0 0.0
    %326 = vmatprep.subr.mxu0 0.0
    %327 = vmatpush1.msra.mxu0 0.0
    %328 = vmatprep.subr.mxu0 0.0
    %329 = vmatpush1.msra.mxu0 0.0
    %330 = vmatprep.subr.mxu0 0.0
    %331 = vmatpush1.msra.mxu0 0.0
    %332 = vmatprep.subr.mxu0 0.0
    %333 = vmatpush1.msra.mxu0 0.0
    %334 = vmatprep.subr.mxu0 0.0
    %335 = vmatpush1.msra.mxu0 0.0
    %336 = vmatprep.subr.mxu0 0.0
    %337 = vmatpush1.msra.mxu0 0.0
    %338 = vmatprep.subr.mxu0 0.0
    %339 = vmatpush1.msra.mxu0 0.0
    %340 = vmatprep.subr.mxu0 0.0
    %341 = vmatpush1.msra.mxu0 0.0
    %342 = vmatprep.subr.mxu0 0.0
    %343 = vmatpush1.msra.mxu0 0.0
    %344 = vmatprep.subr.mxu0 0.0
    %345 = vmatpush1.msra.mxu0 0.0
    %346 = vmatprep.subr.mxu0 0.0
    %347 = vmatpush1.msra.mxu0 0.0
    %348 = vmatprep.subr.mxu0 0.0
    %349 = vmatpush1.msra.mxu0 0.0
    %350 = vmatprep.mubr.f32.mxu0 0.0
    %351 = vmatmul.mubr.f32.gmra.mrb[0].mxu0 %v284
    %v352 = vpop.f32.mrb[0].mxu0
    %v353 = vadd.f32 %v281, %v352
    %v354 = vpop.f32.mrb[0].mxu0
    %355 = vdwg.mxu0
    %356 = vst [vmem:[#allocation3] sm:$0x1] %v353
    // Predicated region
    $region30: #{tpu_custom_call.1} parent=1 // pred_check
      _
    $region31: #{tpu_custom_call.1} parent=1 // pred_check_branch
      %358 = sbr.rel (0) target = $region33
    $region32: #{tpu_custom_call.1} parent=1 // pred_region
      %s360 = ssub.s32 16, 16
      %361 = vsyncadd [#allocation4], %s360
      %s363 = sshll.u32 [#allocation3], 4
      %s364 = int_to_ptr.vmem [resolvable:$true] %s363
      %366 = dma.vmem_to_hbm [thread:$0]  %s364, 16, %s7, [#allocation4]
    $region33: #{tpu_custom_call.1} parent=1 // pred_fallthru
      _
    // Predicated region
    $region34: #{tpu_custom_call.1} parent=1 // pred_check
      _
    $region35: #{tpu_custom_call.1} parent=1 // pred_check_branch
      %368 = sbr.rel (0) target = $region37
    $region36: #{tpu_custom_call.1} parent=1 // pred_region
      %369 = dma.done [#allocation4], 16
    $region37: #{tpu_custom_call.1} parent=1 // pred_fallthru
      _
    %370 = vsyncpa [#allocation4], 1

</llo_original>
